<compile_context>
chip_gen: v7x
topology: tpu7x:2x2x1
jax: 0.10.0
libtpu: 0.0.40
codegen_flags: <defaults>
</compile_context>

<pallas_src>
import functools

import jax
import jax.numpy as jnp
from jax.experimental import pallas as pl
from jax.experimental.pallas import tpu as pltpu


def _round_up(x, m):
    return (x + m - 1) // m * m


def _aggregator_kernel(x_ref, w_ref, b_ref, o_ref, *, aggr_method):
    # x_ref: (tile, K, D) node tile; w_ref: (D, O_pad); b_ref: (1, O_pad);
    # o_ref: (tile, O_pad)
    num_neighbors = x_ref.shape[1]
    if aggr_method in ("mean", "sum"):
        # Unrolled lane-dense accumulate over neighbors (pure VALU adds),
        # f32 accumulation, then cast back to the input dtype for the MXU.
        acc = x_ref[:, 0, :].astype(jnp.float32)
        for k in range(1, num_neighbors):
            acc = acc + x_ref[:, k, :].astype(jnp.float32)
        aggr = acc.astype(x_ref.dtype)
    elif aggr_method == "max":
        aggr = x_ref[:, 0, :]
        for k in range(1, num_neighbors):
            aggr = jnp.maximum(aggr, x_ref[:, k, :])
    else:
        raise ValueError(f"Unknown aggr type: {aggr_method}")

    # Native-dtype MXU matmul with f32 accumulation; fused bias epilogue.
    hidden = jnp.dot(aggr, w_ref[...], preferred_element_type=jnp.float32)
    hidden = hidden + b_ref[...].astype(jnp.float32)
    o_ref[...] = hidden.astype(o_ref.dtype)


def _choose_node_tile(n_nodes, num_neighbors, input_dim, o_pad,
                      x_itemsize, w_itemsize, o_itemsize,
                      requested, vmem_budget_bytes):
    """Largest node tile (multiple of 8, <= requested) whose double-buffered
    footprint fits the VMEM budget."""
    n8 = _round_up(max(n_nodes, 1), 8)
    fixed = 2 * input_dim * o_pad * w_itemsize + 2 * o_pad * w_itemsize  # W + bias
    per_row = 2 * num_neighbors * input_dim * x_itemsize + 2 * o_pad * o_itemsize
    budget_rows = max((vmem_budget_bytes - fixed) // per_row, 8)
    tile = int(min(requested, budget_rows, n8))
    return max((tile // 8) * 8, 8)


def neighbor_aggregator(neighbor_feature, weight, bias=None,
                        aggr_method="mean", node_tile=256,
                        vmem_budget_bytes=40 * 1024 * 1024):
    """neighbor_feature: (N, K, D); weight: (D, O); bias: (O,) or None."""
    N, K, D = neighbor_feature.shape
    Dw, O = weight.shape
    assert D == Dw, "weight input_dim mismatch"
    if aggr_method not in ("mean", "sum", "max"):
        raise ValueError(
            "Unknown aggr type, expected sum, max, or mean, but got "
            f"{aggr_method}")

    out_dtype = neighbor_feature.dtype

    # Fold the 1/K mean scale into the weight (bias is NOT scaled).
    if aggr_method == "mean":
        w_eff = (weight.astype(jnp.float32) * (1.0 / K)).astype(weight.dtype)
    else:
        w_eff = weight

    # Lane-dense output: pad output_dim to a multiple of 128.
    O_pad = _round_up(O, 128)
    if O_pad != O:
        w_eff = jnp.pad(w_eff, ((0, 0), (0, O_pad - O)))
    if bias is None:
        b_eff = jnp.zeros((1, O_pad), weight.dtype)
    else:
        b_eff = jnp.pad(bias.reshape(1, O), ((0, 0), (0, O_pad - O)))

    x_itemsize = jnp.dtype(neighbor_feature.dtype).itemsize
    w_itemsize = jnp.dtype(w_eff.dtype).itemsize
    o_itemsize = jnp.dtype(out_dtype).itemsize

    tile = _choose_node_tile(N, K, D, O_pad, x_itemsize, w_itemsize,
                             o_itemsize, node_tile, vmem_budget_bytes)
    N_pad = _round_up(N, tile)
    x = neighbor_feature
    if N_pad != N:
        # Zero-padded rows only affect padded output rows, sliced off below.
        x = jnp.pad(x, ((0, N_pad - N), (0, 0), (0, 0)))

    grid = (N_pad // tile,)

    # Double-buffered VMEM footprint (weight/bias are constant-index, so this
    # is a conservative upper bound) -> explicit compiler limit, v7x-safe.
    footprint = (2 * tile * K * D * x_itemsize
                 + 2 * D * O_pad * w_itemsize
                 + 2 * O_pad * w_itemsize
                 + 2 * tile * O_pad * o_itemsize)
    vmem_limit = int(min(max(footprint + (4 << 20), 16 << 20), 48 << 20))

    cost = pl.CostEstimate(
        flops=int(2 * N_pad * D * O_pad + N_pad * K * D),
        transcendentals=0,
        bytes_accessed=int(N_pad * K * D * x_itemsize
                           + D * O_pad * w_itemsize
                           + O_pad * w_itemsize
                           + N_pad * O_pad * o_itemsize))

    kernel = functools.partial(_aggregator_kernel, aggr_method=aggr_method)

    out = pl.pallas_call(
        kernel,
        out_shape=jax.ShapeDtypeStruct((N_pad, O_pad), out_dtype),
        grid_spec=pltpu.PrefetchScalarGridSpec(
            num_scalar_prefetch=0,
            grid=grid,
            in_specs=[
                pl.BlockSpec((tile, K, D), lambda i: (i, 0, 0)),
                # Constant index_maps: fetched once, stay VMEM-resident.
                pl.BlockSpec((D, O_pad), lambda i: (0, 0)),
                pl.BlockSpec((1, O_pad), lambda i: (0, 0)),
            ],
            out_specs=pl.BlockSpec((tile, O_pad), lambda i: (i, 0)),
        ),
        compiler_params=pltpu.CompilerParams(
            dimension_semantics=("parallel",),
            vmem_limit_bytes=vmem_limit),
        cost_estimate=cost,
    )(x, w_eff, b_eff)

    if N_pad != N or O_pad != O:
        out = out[:N, :O]
    return out


def init_params(key, input_dim, output_dim, use_bias=False):
    # kaiming_uniform_-style init: bound = sqrt(6 / fan_in); PyTorch's fan_in
    # for a (input_dim, output_dim) tensor is size(1) = output_dim.
    bound = (6.0 / output_dim) ** 0.5
    weight = jax.random.uniform(key, (input_dim, output_dim),
                                minval=-bound, maxval=bound,
                                dtype=jnp.float32)
    bias = jnp.zeros((output_dim,), jnp.float32) if use_bias else None
    return weight, bias


if __name__ == "__main__":
    key = jax.random.PRNGKey(0)
    k_x, k_w, k_b = jax.random.split(key, 3)

    num_neighbors, input_dim, output_dim = 8, 32, 32

    # --- test 1: mean aggregation, no bias (module defaults) ---
    num_nodes = 16
    x = jax.random.normal(k_x, (num_nodes, num_neighbors, input_dim),
                          dtype=jnp.float32)
    weight, bias = init_params(k_w, input_dim, output_dim, use_bias=False)
    out = jax.block_until_ready(
        neighbor_aggregator(x, weight, bias, aggr_method="mean"))
    ref = jnp.matmul(jnp.mean(x, axis=1), weight)
    assert out.shape == (num_nodes, output_dim)
    assert jnp.allclose(out, ref, atol=1e-4, rtol=1e-4), "mean path mismatch"

    # --- test 2: max aggregation with bias, ragged N, multi-step grid ---
    num_nodes2 = 44
    x2 = jax.random.normal(k_x, (num_nodes2, num_neighbors, input_dim),
                           dtype=jnp.float32)
    weight2, _ = init_params(k_w, input_dim, output_dim, use_bias=True)
    bias2 = jax.random.normal(k_b, (output_dim,), dtype=jnp.float32)
    out2 = jax.block_until_ready(
        neighbor_aggregator(x2, weight2, bias2, aggr_method="max",
                            node_tile=16))
    ref2 = jnp.matmul(jnp.max(x2, axis=1), weight2) + bias2
    assert out2.shape == (num_nodes2, output_dim)
    assert jnp.allclose(out2, ref2, atol=1e-4, rtol=1e-4), "max path mismatch"

    print("KERNEL_OK")
</pallas_src>

<mosaic_0001>
module attributes {stable_mosaic.version = 11 : i64} {
  func.func @_aggregator_kernel(%arg0: i32, %arg1: memref<16x8x32xf32, #tpu.memory_space<vmem>>, %arg2: memref<32x128xf32, #tpu.memory_space<vmem>>, %arg3: memref<1x128xf32, #tpu.memory_space<vmem>>, %arg4: memref<16x128xf32, #tpu.memory_space<vmem>>) attributes {dimension_semantics = [#tpu.dimension_semantics<parallel>], iteration_bounds = array<i64: 1>, scalar_prefetch = 0 : i64, scratch_operands = 0 : i64, tpu.core_type = #tpu.core_type<tc>, window_params = [{transform_indices = @transform_0, window_bounds = array<i64: 16, 8, 32>}, {pipeline_mode = #tpu.pipeline_mode<synchronous>, transform_indices = @transform_1, window_bounds = array<i64: 32, 128>}, {pipeline_mode = #tpu.pipeline_mode<synchronous>, transform_indices = @transform_2, window_bounds = array<i64: 1, 128>}, {transform_indices = @transform_3, window_bounds = array<i64: 16, 128>}]} {
    %c0 = arith.constant 0 : index
    %c0_0 = arith.constant 0 : index
    %c0_1 = arith.constant 0 : index
    %0 = vector.load %arg1[%c0, %c0_0, %c0_1] : memref<16x8x32xf32, #tpu.memory_space<vmem>>, vector<16x1x32xf32>
    %1 = vector.shape_cast %0 : vector<16x1x32xf32> to vector<16x32xf32>
    %c0_2 = arith.constant 0 : index
    %c1 = arith.constant 1 : index
    %c0_3 = arith.constant 0 : index
    %2 = vector.load %arg1[%c0_2, %c1, %c0_3] : memref<16x8x32xf32, #tpu.memory_space<vmem>>, vector<16x1x32xf32>
    %3 = vector.shape_cast %2 : vector<16x1x32xf32> to vector<16x32xf32>
    %4 = arith.addf %1, %3 : vector<16x32xf32>
    %c0_4 = arith.constant 0 : index
    %c2 = arith.constant 2 : index
    %c0_5 = arith.constant 0 : index
    %5 = vector.load %arg1[%c0_4, %c2, %c0_5] : memref<16x8x32xf32, #tpu.memory_space<vmem>>, vector<16x1x32xf32>
    %6 = vector.shape_cast %5 : vector<16x1x32xf32> to vector<16x32xf32>
    %7 = arith.addf %4, %6 : vector<16x32xf32>
    %c0_6 = arith.constant 0 : index
    %c3 = arith.constant 3 : index
    %c0_7 = arith.constant 0 : index
    %8 = vector.load %arg1[%c0_6, %c3, %c0_7] : memref<16x8x32xf32, #tpu.memory_space<vmem>>, vector<16x1x32xf32>
    %9 = vector.shape_cast %8 : vector<16x1x32xf32> to vector<16x32xf32>
    %10 = arith.addf %7, %9 : vector<16x32xf32>
    %c0_8 = arith.constant 0 : index
    %c4 = arith.constant 4 : index
    %c0_9 = arith.constant 0 : index
    %11 = vector.load %arg1[%c0_8, %c4, %c0_9] : memref<16x8x32xf32, #tpu.memory_space<vmem>>, vector<16x1x32xf32>
    %12 = vector.shape_cast %11 : vector<16x1x32xf32> to vector<16x32xf32>
    %13 = arith.addf %10, %12 : vector<16x32xf32>
    %c0_10 = arith.constant 0 : index
    %c5 = arith.constant 5 : index
    %c0_11 = arith.constant 0 : index
    %14 = vector.load %arg1[%c0_10, %c5, %c0_11] : memref<16x8x32xf32, #tpu.memory_space<vmem>>, vector<16x1x32xf32>
    %15 = vector.shape_cast %14 : vector<16x1x32xf32> to vector<16x32xf32>
    %16 = arith.addf %13, %15 : vector<16x32xf32>
    %c0_12 = arith.constant 0 : index
    %c6 = arith.constant 6 : index
    %c0_13 = arith.constant 0 : index
    %17 = vector.load %arg1[%c0_12, %c6, %c0_13] : memref<16x8x32xf32, #tpu.memory_space<vmem>>, vector<16x1x32xf32>
    %18 = vector.shape_cast %17 : vector<16x1x32xf32> to vector<16x32xf32>
    %19 = arith.addf %16, %18 : vector<16x32xf32>
    %c0_14 = arith.constant 0 : index
    %c7 = arith.constant 7 : index
    %c0_15 = arith.constant 0 : index
    %20 = vector.load %arg1[%c0_14, %c7, %c0_15] : memref<16x8x32xf32, #tpu.memory_space<vmem>>, vector<16x1x32xf32>
    %21 = vector.shape_cast %20 : vector<16x1x32xf32> to vector<16x32xf32>
    %22 = arith.addf %19, %21 : vector<16x32xf32>
    %c0_16 = arith.constant 0 : index
    %c0_17 = arith.constant 0 : index
    %23 = vector.load %arg2[%c0_16, %c0_17] : memref<32x128xf32, #tpu.memory_space<vmem>>, vector<32x128xf32>
    %cst = arith.constant dense<0.000000e+00> : vector<16x128xf32>
    %24 = tpu.matmul %22, %23, %cst {dimension_numbers = #tpu.dot_dimension_numbers<[1], [0], [0], [1], [0, 0, 1, 1], [], []>} : vector<16x32xf32>, vector<32x128xf32>, vector<16x128xf32> -> vector<16x128xf32>
    %c0_18 = arith.constant 0 : index
    %c0_19 = arith.constant 0 : index
    %25 = vector.load %arg3[%c0_18, %c0_19] : memref<1x128xf32, #tpu.memory_space<vmem>>, vector<1x128xf32>
    %26 = vector.broadcast %25 : vector<1x128xf32> to vector<16x128xf32>
    %27 = arith.addf %24, %26 : vector<16x128xf32>
    %c0_20 = arith.constant 0 : index
    %c0_21 = arith.constant 0 : index
    %28 = vector.load %arg4[%c0_20, %c0_21] : memref<16x128xf32, #tpu.memory_space<vmem>>, vector<16x128xf32>
    tpu.vector_store %arg4[%c0_20, %c0_21], %27 {strides = array<i32>} : memref<16x128xf32, #tpu.memory_space<vmem>>, vector<16x128xf32>,
    return
  }
  func.func @transform_0(%arg0: i32) -> (i32, i32, i32) {
    %c0_i32 = arith.constant 0 : i32
    %c0_i32_0 = arith.constant 0 : i32
    %c0_i32_1 = arith.constant 0 : i32
    return %arg0, %c0_i32, %c0_i32_0 : i32, i32, i32
  }
  func.func @transform_1(%arg0: i32) -> (i32, i32) {
    %c0_i32 = arith.constant 0 : i32
    %c0_i32_0 = arith.constant 0 : i32
    %c0_i32_1 = arith.constant 0 : i32
    return %c0_i32, %c0_i32_0 : i32, i32
  }
  func.func @transform_2(%arg0: i32) -> (i32, i32) {
    %c0_i32 = arith.constant 0 : i32
    %c0_i32_0 = arith.constant 0 : i32
    %c0_i32_1 = arith.constant 0 : i32
    return %c0_i32, %c0_i32_0 : i32, i32
  }
  func.func @transform_3(%arg0: i32) -> (i32, i32) {
    %c0_i32 = arith.constant 0 : i32
    %c0_i32_0 = arith.constant 0 : i32
    return %arg0, %c0_i32 : i32, i32
  }
}

</mosaic_0001>

<llo_original>
// kernel: tpu_custom_call.1
$region0: #{tpu_custom_call.1}
  #allocation0 [shape = 'u32[]', space=smem, size = 0x4, offset = 0x4, fixed_abs, tag = 'smem constant byte address 0x4 - core index']
  #allocation1 [shape = 'u32[144,128]{1,0:T(1,128)}', space=vmem, size = 0x12000, scoped, tag = 'internal scratch']
  %s0 = inlined_call_operand.hbm [shape: f32[16,8,32], index: 0, kind: input, shape index: {}]
  %s1 = inlined_call_operand.hbm [shape: f32[32,128], index: 1, kind: input, shape index: {}]
  %s2 = inlined_call_operand.vmem [shape: f32[1,128], index: 2, kind: input, shape index: {}]
  %s3 = inlined_call_operand.hbm [shape: f32[16,128], index: 3, kind: output, shape index: {}]
  %s4 = sld [smem:[#allocation0]]
  $region30: #{tpu_custom_call.1} parent=0
    _
  %s6 = ssub.s32 1, %s4
  %s7 = scalar_select 0, %s6, %s4
  $region1: #{tpu_custom_call.1} parent=0
    #allocation2 [shape = 'u8[65536]{0}', space=vmem, size = 0x10000, scoped, tag = 'input window, operand 0, single buffered']
    #allocation3 [shape = 's32[1]{0}', space=sflag, size = 0x4, scoped, tag = 'scoped memory for tpu_custom_call.1']
    #allocation4 [shape = 's32[1]{0}', space=sflag, size = 0x4, scoped, tag = 'scoped memory for tpu_custom_call.1']
    #allocation5 [shape = 'u8[16384]{0}', space=vmem, size = 0x4000, scoped, tag = 'input window, operand 1, single buffered']
    #allocation6 [shape = 's32[1]{0}', space=sflag, size = 0x4, scoped, tag = 'scoped memory for tpu_custom_call.1']
    #allocation7 [shape = 'u8[8192]{0}', space=vmem, size = 0x2000, scoped, tag = 'output window, operand 0, single buffered']
    %8 = vsyncpa [#allocation3], 0
    %9 = vsyncpa [#allocation6], 0
    %10 = vsyncpa [#allocation4], 0
    // Predicated region
    $region2: #{tpu_custom_call.1} parent=1 // pred_check
      _
    $region3: #{tpu_custom_call.1} parent=1 // pred_check_branch
      %12 = sbr.rel (0) target = $region5
    $region4: #{tpu_custom_call.1} parent=1 // pred_region
      %s14 = ssub.s32 2048, 2048
      %15 = vsyncadd [#allocation3], %s14
      %s16 = sshll.u32 [#allocation2], 4
      %s17 = int_to_ptr.vmem [resolvable:$true] %s16
      %22 = dma.hbm_to_vmem [thread:$0]  %s0, 2048, %s17, [#allocation3], 128, 128, 8
    $region5: #{tpu_custom_call.1} parent=1 // pred_fallthru
      _
    // Predicated region
    $region6: #{tpu_custom_call.1} parent=1 // pred_check
      _
    $region7: #{tpu_custom_call.1} parent=1 // pred_check_branch
      %24 = sbr.rel (0) target = $region9
    $region8: #{tpu_custom_call.1} parent=1 // pred_region
      %s26 = ssub.s32 512, 512
      %27 = vsyncadd [#allocation6], %s26
      %s28 = sshll.u32 [#allocation5], 4
      %s29 = int_to_ptr.vmem [resolvable:$true] %s28
      %34 = dma.hbm_to_vmem [thread:$0]  %s1, 512, %s29, [#allocation6], 128, 128, 8
    $region9: #{tpu_custom_call.1} parent=1 // pred_fallthru
      _
    // Predicated region
    $region10: #{tpu_custom_call.1} parent=1 // pred_check
      _
    $region11: #{tpu_custom_call.1} parent=1 // pred_check_branch
      %36 = sbr.rel (0) target = $region13
    $region12: #{tpu_custom_call.1} parent=1 // pred_region
      _
    $region13: #{tpu_custom_call.1} parent=1 // pred_fallthru
      _
    // Predicated region
    $region14: #{tpu_custom_call.1} parent=1 // pred_check
      _
    $region15: #{tpu_custom_call.1} parent=1 // pred_check_branch
      %38 = sbr.rel (0) target = $region17
    $region16: #{tpu_custom_call.1} parent=1 // pred_region
      %39 = dma.done [#allocation3], 2048
    $region17: #{tpu_custom_call.1} parent=1 // pred_fallthru
      _
    // Predicated region
    $region18: #{tpu_custom_call.1} parent=1 // pred_check
      _
    $region19: #{tpu_custom_call.1} parent=1 // pred_check_branch
      %41 = sbr.rel (0) target = $region21
    $region20: #{tpu_custom_call.1} parent=1 // pred_region
      %42 = dma.done [#allocation6], 512
    $region21: #{tpu_custom_call.1} parent=1 // pred_fallthru
      _
    %v43 = vld [vmem:[#allocation2] sm:$0x1]
    %v44 = vld [vmem:[#allocation2 + $0x8] sm:$0x1]
    %v45 = vld [vmem:[#allocation2 + $0x10] sm:$0x1]
    %v46 = vld [vmem:[#allocation2 + $0x18] sm:$0x1]
    %v47 = vld [vmem:[#allocation2 + $0x20] sm:$0x1]
    %v48 = vld [vmem:[#allocation2 + $0x28] sm:$0x1]
    %v49 = vld [vmem:[#allocation2 + $0x30] sm:$0x1]
    %v50 = vld [vmem:[#allocation2 + $0x38] sm:$0x1]
    %v51 = vld [vmem:[#allocation2 + $0x40] sm:$0x1]
    %v52 = vld [vmem:[#allocation2 + $0x48] sm:$0x1]
    %v53 = vld [vmem:[#allocation2 + $0x50] sm:$0x1]
    %v54 = vld [vmem:[#allocation2 + $0x58] sm:$0x1]
    %v55 = vld [vmem:[#allocation2 + $0x60] sm:$0x1]
    %v56 = vld [vmem:[#allocation2 + $0x68] sm:$0x1]
    %v57 = vld [vmem:[#allocation2 + $0x70] sm:$0x1]
    %v58 = vld [vmem:[#allocation2 + $0x78] sm:$0x1]
    %v59 = vld [vmem:[#allocation2 + $0x1] sm:$0x1]
    %v60 = vld [vmem:[#allocation2 + $0x9] sm:$0x1]
    %v61 = vld [vmem:[#allocation2 + $0x11] sm:$0x1]
    %v62 = vld [vmem:[#allocation2 + $0x19] sm:$0x1]
    %v63 = vld [vmem:[#allocation2 + $0x21] sm:$0x1]
    %v64 = vld [vmem:[#allocation2 + $0x29] sm:$0x1]
    %v65 = vld [vmem:[#allocation2 + $0x31] sm:$0x1]
    %v66 = vld [vmem:[#allocation2 + $0x39] sm:$0x1]
    %v67 = vld [vmem:[#allocation2 + $0x41] sm:$0x1]
    %v68 = vld [vmem:[#allocation2 + $0x49] sm:$0x1]
    %v69 = vld [vmem:[#allocation2 + $0x51] sm:$0x1]
    %v70 = vld [vmem:[#allocation2 + $0x59] sm:$0x1]
    %v71 = vld [vmem:[#allocation2 + $0x61] sm:$0x1]
    %v72 = vld [vmem:[#allocation2 + $0x69] sm:$0x1]
    %v73 = vld [vmem:[#allocation2 + $0x71] sm:$0x1]
    %v74 = vld [vmem:[#allocation2 + $0x79] sm:$0x1]
    %v75 = vadd.f32 %v43, %v59
    %v76 = vadd.f32 %v44, %v60
    %v77 = vadd.f32 %v45, %v61
    %v78 = vadd.f32 %v46, %v62
    %v79 = vadd.f32 %v47, %v63
    %v80 = vadd.f32 %v48, %v64
    %v81 = vadd.f32 %v49, %v65
    %v82 = vadd.f32 %v50, %v66
    %v83 = vadd.f32 %v51, %v67
    %v84 = vadd.f32 %v52, %v68
    %v85 = vadd.f32 %v53, %v69
    %v86 = vadd.f32 %v54, %v70
    %v87 = vadd.f32 %v55, %v71
    %v88 = vadd.f32 %v56, %v72
    %v89 = vadd.f32 %v57, %v73
    %v90 = vadd.f32 %v58, %v74
    %v91 = vld [vmem:[#allocation2 + $0x2] sm:$0x1]
    %v92 = vld [vmem:[#allocation2 + $0xa] sm:$0x1]
    %v93 = vld [vmem:[#allocation2 + $0x12] sm:$0x1]
    %v94 = vld [vmem:[#allocation2 + $0x1a] sm:$0x1]
    %v95 = vld [vmem:[#allocation2 + $0x22] sm:$0x1]
    %v96 = vld [vmem:[#allocation2 + $0x2a] sm:$0x1]
    %v97 = vld [vmem:[#allocation2 + $0x32] sm:$0x1]
    %v98 = vld [vmem:[#allocation2 + $0x3a] sm:$0x1]
    %v99 = vld [vmem:[#allocation2 + $0x42] sm:$0x1]
    %v100 = vld [vmem:[#allocation2 + $0x4a] sm:$0x1]
    %v101 = vld [vmem:[#allocation2 + $0x52] sm:$0x1]
    %v102 = vld [vmem:[#allocation2 + $0x5a] sm:$0x1]
    %v103 = vld [vmem:[#allocation2 + $0x62] sm:$0x1]
    %v104 = vld [vmem:[#allocation2 + $0x6a] sm:$0x1]
    %v105 = vld [vmem:[#allocation2 + $0x72] sm:$0x1]
    %v106 = vld [vmem:[#allocation2 + $0x7a] sm:$0x1]
    %v107 = vadd.f32 %v75, %v91
    %v108 = vadd.f32 %v76, %v92
    %v109 = vadd.f32 %v77, %v93
    %v110 = vadd.f32 %v78, %v94
    %v111 = vadd.f32 %v79, %v95
    %v112 = vadd.f32 %v80, %v96
    %v113 = vadd.f32 %v81, %v97
    %v114 = vadd.f32 %v82, %v98
    %v115 = vadd.f32 %v83, %v99
    %v116 = vadd.f32 %v84, %v100
    %v117 = vadd.f32 %v85, %v101
    %v118 = vadd.f32 %v86, %v102
    %v119 = vadd.f32 %v87, %v103
    %v120 = vadd.f32 %v88, %v104
    %v121 = vadd.f32 %v89, %v105
    %v122 = vadd.f32 %v90, %v106
    %v123 = vld [vmem:[#allocation2 + $0x3] sm:$0x1]
    %v124 = vld [vmem:[#allocation2 + $0xb] sm:$0x1]
    %v125 = vld [vmem:[#allocation2 + $0x13] sm:$0x1]
    %v126 = vld [vmem:[#allocation2 + $0x1b] sm:$0x1]
    %v127 = vld [vmem:[#allocation2 + $0x23] sm:$0x1]
    %v128 = vld [vmem:[#allocation2 + $0x2b] sm:$0x1]
    %v129 = vld [vmem:[#allocation2 + $0x33] sm:$0x1]
    %v130 = vld [vmem:[#allocation2 + $0x3b] sm:$0x1]
    %v131 = vld [vmem:[#allocation2 + $0x43] sm:$0x1]
    %v132 = vld [vmem:[#allocation2 + $0x4b] sm:$0x1]
    %v133 = vld [vmem:[#allocation2 + $0x53] sm:$0x1]
    %v134 = vld [vmem:[#allocation2 + $0x5b] sm:$0x1]
    %v135 = vld [vmem:[#allocation2 + $0x63] sm:$0x1]
    %v136 = vld [vmem:[#allocation2 + $0x6b] sm:$0x1]
    %v137 = vld [vmem:[#allocation2 + $0x73] sm:$0x1]
    %v138 = vld [vmem:[#allocation2 + $0x7b] sm:$0x1]
    %v139 = vadd.f32 %v107, %v123
    %v140 = vadd.f32 %v108, %v124
    %v141 = vadd.f32 %v109, %v125
    %v142 = vadd.f32 %v110, %v126
    %v143 = vadd.f32 %v111, %v127
    %v144 = vadd.f32 %v112, %v128
    %v145 = vadd.f32 %v113, %v129
    %v146 = vadd.f32 %v114, %v130
    %v147 = vadd.f32 %v115, %v131
    %v148 = vadd.f32 %v116, %v132
    %v149 = vadd.f32 %v117, %v133
    %v150 = vadd.f32 %v118, %v134
    %v151 = vadd.f32 %v119, %v135
    %v152 = vadd.f32 %v120, %v136
    %v153 = vadd.f32 %v121, %v137
    %v154 = vadd.f32 %v122, %v138
    %v155 = vld [vmem:[#allocation2 + $0x4] sm:$0x1]
    %v156 = vld [vmem:[#allocation2 + $0xc] sm:$0x1]
    %v157 = vld [vmem:[#allocation2 + $0x14] sm:$0x1]
    %v158 = vld [vmem:[#allocation2 + $0x1c] sm:$0x1]
    %v159 = vld [vmem:[#allocation2 + $0x24] sm:$0x1]
    %v160 = vld [vmem:[#allocation2 + $0x2c] sm:$0x1]
    %v161 = vld [vmem:[#allocation2 + $0x34] sm:$0x1]
    %v162 = vld [vmem:[#allocation2 + $0x3c] sm:$0x1]
    %v163 = vld [vmem:[#allocation2 + $0x44] sm:$0x1]
    %v164 = vld [vmem:[#allocation2 + $0x4c] sm:$0x1]
    %v165 = vld [vmem:[#allocation2 + $0x54] sm:$0x1]
    %v166 = vld [vmem:[#allocation2 + $0x5c] sm:$0x1]
    %v167 = vld [vmem:[#allocation2 + $0x64] sm:$0x1]
    %v168 = vld [vmem:[#allocation2 + $0x6c] sm:$0x1]
    %v169 = vld [vmem:[#allocation2 + $0x74] sm:$0x1]
    %v170 = vld [vmem:[#allocation2 + $0x7c] sm:$0x1]
    %v171 = vadd.f32 %v139, %v155
    %v172 = vadd.f32 %v140, %v156
    %v173 = vadd.f32 %v141, %v157
    %v174 = vadd.f32 %v142, %v158
    %v175 = vadd.f32 %v143, %v159
    %v176 = vadd.f32 %v144, %v160
    %v177 = vadd.f32 %v145, %v161
    %v178 = vadd.f32 %v146, %v162
    %v179 = vadd.f32 %v147, %v163
    %v180 = vadd.f32 %v148, %v164
    %v181 = vadd.f32 %v149, %v165
    %v182 = vadd.f32 %v150, %v166
    %v183 = vadd.f32 %v151, %v167
    %v184 = vadd.f32 %v152, %v168
    %v185 = vadd.f32 %v153, %v169
    %v186 = vadd.f32 %v154, %v170
    %v187 = vld [vmem:[#allocation2 + $0x5] sm:$0x1]
    %v188 = vld [vmem:[#allocation2 + $0xd] sm:$0x1]
    %v189 = vld [vmem:[#allocation2 + $0x15] sm:$0x1]
    %v190 = vld [vmem:[#allocation2 + $0x1d] sm:$0x1]
    %v191 = vld [vmem:[#allocation2 + $0x25] sm:$0x1]
    %v192 = vld [vmem:[#allocation2 + $0x2d] sm:$0x1]
    %v193 = vld [vmem:[#allocation2 + $0x35] sm:$0x1]
    %v194 = vld [vmem:[#allocation2 + $0x3d] sm:$0x1]
    %v195 = vld [vmem:[#allocation2 + $0x45] sm:$0x1]
    %v196 = vld [vmem:[#allocation2 + $0x4d] sm:$0x1]
    %v197 = vld [vmem:[#allocation2 + $0x55] sm:$0x1]
    %v198 = vld [vmem:[#allocation2 + $0x5d] sm:$0x1]
    %v199 = vld [vmem:[#allocation2 + $0x65] sm:$0x1]
    %v200 = vld [vmem:[#allocation2 + $0x6d] sm:$0x1]
    %v201 = vld [vmem:[#allocation2 + $0x75] sm:$0x1]
    %v202 = vld [vmem:[#allocation2 + $0x7d] sm:$0x1]
    %v203 = vadd.f32 %v171, %v187
    %v204 = vadd.f32 %v172, %v188
    %v205 = vadd.f32 %v173, %v189
    %v206 = vadd.f32 %v174, %v190
    %v207 = vadd.f32 %v175, %v191
    %v208 = vadd.f32 %v176, %v192
    %v209 = vadd.f32 %v177, %v193
    %v210 = vadd.f32 %v178, %v194
    %v211 = vadd.f32 %v179, %v195
    %v212 = vadd.f32 %v180, %v196
    %v213 = vadd.f32 %v181, %v197
    %v214 = vadd.f32 %v182, %v198
    %v215 = vadd.f32 %v183, %v199
    %v216 = vadd.f32 %v184, %v200
    %v217 = vadd.f32 %v185, %v201
    %v218 = vadd.f32 %v186, %v202
    %v219 = vld [vmem:[#allocation2 + $0x6] sm:$0x1]
    %v220 = vld [vmem:[#allocation2 + $0xe] sm:$0x1]
    %v221 = vld [vmem:[#allocation2 + $0x16] sm:$0x1]
    %v222 = vld [vmem:[#allocation2 + $0x1e] sm:$0x1]
    %v223 = vld [vmem:[#allocation2 + $0x26] sm:$0x1]
    %v224 = vld [vmem:[#allocation2 + $0x2e] sm:$0x1]
    %v225 = vld [vmem:[#allocation2 + $0x36] sm:$0x1]
    %v226 = vld [vmem:[#allocation2 + $0x3e] sm:$0x1]
    %v227 = vld [vmem:[#allocation2 + $0x46] sm:$0x1]
    %v228 = vld [vmem:[#allocation2 + $0x4e] sm:$0x1]
    %v229 = vld [vmem:[#allocation2 + $0x56] sm:$0x1]
    %v230 = vld [vmem:[#allocation2 + $0x5e] sm:$0x1]
    %v231 = vld [vmem:[#allocation2 + $0x66] sm:$0x1]
    %v232 = vld [vmem:[#allocation2 + $0x6e] sm:$0x1]
    %v233 = vld [vmem:[#allocation2 + $0x76] sm:$0x1]
    %v234 = vld [vmem:[#allocation2 + $0x7e] sm:$0x1]
    %v235 = vadd.f32 %v203, %v219
    %v236 = vadd.f32 %v204, %v220
    %v237 = vadd.f32 %v205, %v221
    %v238 = vadd.f32 %v206, %v222
    %v239 = vadd.f32 %v207, %v223
    %v240 = vadd.f32 %v208, %v224
    %v241 = vadd.f32 %v209, %v225
    %v242 = vadd.f32 %v210, %v226
    %v243 = vadd.f32 %v211, %v227
    %v244 = vadd.f32 %v212, %v228
    %v245 = vadd.f32 %v213, %v229
    %v246 = vadd.f32 %v214, %v230
    %v247 = vadd.f32 %v215, %v231
    %v248 = vadd.f32 %v216, %v232
    %v249 = vadd.f32 %v217, %v233
    %v250 = vadd.f32 %v218, %v234
    %v251 = vld [vmem:[#allocation2 + $0x7] sm:$0x1]
    %v252 = vld [vmem:[#allocation2 + $0xf] sm:$0x1]
    %v253 = vld [vmem:[#allocation2 + $0x17] sm:$0x1]
    %v254 = vld [vmem:[#allocation2 + $0x1f] sm:$0x1]
    %v255 = vld [vmem:[#allocation2 + $0x27] sm:$0x1]
    %v256 = vld [vmem:[#allocation2 + $0x2f] sm:$0x1]
    %v257 = vld [vmem:[#allocation2 + $0x37] sm:$0x1]
    %v258 = vld [vmem:[#allocation2 + $0x3f] sm:$0x1]
    %v259 = vld [vmem:[#allocation2 + $0x47] sm:$0x1]
    %v260 = vld [vmem:[#allocation2 + $0x4f] sm:$0x1]
    %v261 = vld [vmem:[#allocation2 + $0x57] sm:$0x1]
    %v262 = vld [vmem:[#allocation2 + $0x5f] sm:$0x1]
    %v263 = vld [vmem:[#allocation2 + $0x67] sm:$0x1]
    %v264 = vld [vmem:[#allocation2 + $0x6f] sm:$0x1]
    %v265 = vld [vmem:[#allocation2 + $0x77] sm:$0x1]
    %v266 = vld [vmem:[#allocation2 + $0x7f] sm:$0x1]
    %v267 = vadd.f32 %v235, %v251
    %v268 = vadd.f32 %v236, %v252
    %v269 = vadd.f32 %v237, %v253
    %v270 = vadd.f32 %v238, %v254
    %v271 = vadd.f32 %v239, %v255
    %v272 = vadd.f32 %v240, %v256
    %v273 = vadd.f32 %v241, %v257
    %v274 = vadd.f32 %v242, %v258
    %v275 = vadd.f32 %v243, %v259
    %v276 = vadd.f32 %v244, %v260
    %v277 = vadd.f32 %v245, %v261
    %v278 = vadd.f32 %v246, %v262
    %v279 = vadd.f32 %v247, %v263
    %v280 = vadd.f32 %v248, %v264
    %v281 = vadd.f32 %v249, %v265
    %v282 = vadd.f32 %v250, %v266
    %v283 = vld [vmem:[#allocation5] sm:$0xff]
    %v284 = vld [vmem:[#allocation5 + $0x8] sm:$0xff]
    %v285 = vld [vmem:[#allocation5 + $0x10] sm:$0xff]
    %v286 = vld [vmem:[#allocation5 + $0x18] sm:$0xff]
    %v287 = vld [vmem:[%s2] sm:$0x1]
    %v289 = vlaneseq
    %v290 = vshrl.u32 %v289, 7
    %v291 = vsub.s32 0, %v290
    %v292 = vrot.slane %v287, %v291
    %v310 = vrot.slane %v268, 7
    %vm311 = vcmask 1041409
    %v312 = vsel %vm311, %v310, %v267
    %v313 = vrot.slane %v269, 6
    %vm314 = vcmask 1042434
    %v315 = vsel %vm314, %v313, %v312
    %v316 = vrot.slane %v270, 5
    %vm317 = vcmask 1043459
    %v318 = vsel %vm317, %v316, %v315
    %v319 = vrot.slane %v271, 4
    %vm320 = vcmask 1044484
    %v321 = vsel %vm320, %v319, %v318
    %v322 = vrot.slane %v272, 3
    %vm323 = vcmask 1045509
    %v324 = vsel %vm323, %v322, %v321
    %v325 = vrot.slane %v273, 2
    %vm326 = vcmask 1046534
    %v327 = vsel %vm326, %v325, %v324
    %v328 = vrot.slane %v274, 1
    %vm329 = vcmask 1047559
    %v330 = vsel %vm329, %v328, %v327
    %v331 = vrot.slane %v276, 7
    %v332 = vsel %vm311, %v331, %v275
    %v333 = vrot.slane %v277, 6
    %v334 = vsel %vm314, %v333, %v332
    %v335 = vrot.slane %v278, 5
    %v336 = vsel %vm317, %v335, %v334
    %v337 = vrot.slane %v279, 4
    %v338 = vsel %vm320, %v337, %v336
    %v339 = vrot.slane %v280, 3
    %v340 = vsel %vm323, %v339, %v338
    %v341 = vrot.slane %v281, 2
    %v342 = vsel %vm326, %v341, %v340
    %v343 = vrot.slane %v282, 1
    %v344 = vsel %vm329, %v343, %v342
    %vm345 = vcmask 261120
    %v346 = vsel %vm345, %v330, 0
    %v348 = vsel %vm345, %v344, 0
    %350 = vmatprep.subr.mxu0 0.0
    %351 = vmatpush1.msra.mxu0 %v283
    %352 = vmatprep.subr.mxu0 0.0
    %353 = vmatpush1.msra.mxu0 %v284
    %354 = vmatprep.subr.mxu0 0.0
    %355 = vmatpush1.msra.mxu0 %v285
    %356 = vmatprep.subr.mxu0 0.0
    %357 = vmatpush1.msra.mxu0 %v286
    %358 = vmatprep.subr.mxu0 0.0
    %359 = vmatpush1.msra.mxu0 0.0
    %360 = vmatprep.subr.mxu0 0.0
    %361 = vmatpush1.msra.mxu0 0.0
    %362 = vmatprep.subr.mxu0 0.0
    %363 = vmatpush1.msra.mxu0 0.0
    %364 = vmatprep.subr.mxu0 0.0
    %365 = vmatpush1.msra.mxu0 0.0
    %366 = vmatprep.subr.mxu0 0.0
    %367 = vmatpush1.msra.mxu0 0.0
    %368 = vmatprep.subr.mxu0 0.0
    %369 = vmatpush1.msra.mxu0 0.0
    %370 = vmatprep.subr.mxu0 0.0
    %371 = vmatpush1.msra.mxu0 0.0
    %372 = vmatprep.subr.mxu0 0.0
    %373 = vmatpush1.msra.mxu0 0.0
    %374 = vmatprep.subr.mxu0 0.0
    %375 = vmatpush1.msra.mxu0 0.0
    %376 = vmatprep.subr.mxu0 0.0
    %377 = vmatpush1.msra.mxu0 0.0
    %378 = vmatprep.subr.mxu0 0.0
    %379 = vmatpush1.msra.mxu0 0.0
    %380 = vmatprep.subr.mxu0 0.0
    %381 = vmatpush1.msra.mxu0 0.0
    %382 = vmatprep.subr.mxu0 0.0
    %383 = vmatpush1.msra.mxu0 0.0
    %384 = vmatprep.subr.mxu0 0.0
    %385 = vmatpush1.msra.mxu0 0.0
    %386 = vmatprep.subr.mxu0 0.0
    %387 = vmatpush1.msra.mxu0 0.0
    %388 = vmatprep.subr.mxu0 0.0
    %389 = vmatpush1.msra.mxu0 0.0
    %390 = vmatprep.subr.mxu0 0.0
    %391 = vmatpush1.msra.mxu0 0.0
    %392 = vmatprep.subr.mxu0 0.0
    %393 = vmatpush1.msra.mxu0 0.0
    %394 = vmatprep.subr.mxu0 0.0
    %395 = vmatpush1.msra.mxu0 0.0
    %396 = vmatprep.subr.mxu0 0.0
    %397 = vmatpush1.msra.mxu0 0.0
    %398 = vmatprep.subr.mxu0 0.0
    %399 = vmatpush1.msra.mxu0 0.0
    %400 = vmatprep.subr.mxu0 0.0
    %401 = vmatpush1.msra.mxu0 0.0
    %402 = vmatprep.subr.mxu0 0.0
    %403 = vmatpush1.msra.mxu0 0.0
    %404 = vmatprep.subr.mxu0 0.0
    %405 = vmatpush1.msra.mxu0 0.0
    %406 = vmatprep.subr.mxu0 0.0
    %407 = vmatpush1.msra.mxu0 0.0
    %408 = vmatprep.subr.mxu0 0.0
    %409 = vmatpush1.msra.mxu0 0.0
    %410 = vmatprep.subr.mxu0 0.0
    %411 = vmatpush1.msra.mxu0 0.0
    %412 = vmatprep.subr.mxu0 0.0
    %413 = vmatpush1.msra.mxu0 0.0
    %414 = vmatprep.mubr.f32.mxu0 0.0
    %415 = vmatmul.mubr.f32.gmra.mrb[0].mxu0 %v346
    %v416 = vpop.f32.mrb[0].mxu0
    %v417 = vadd.f32 %v292, %v416
    %v418 = vpop.f32.mrb[0].mxu0
    %419 = vmatprep.mubr.f32.mxu0 0.0
    %420 = vmatmul.mubr.f32.gmra.mrb[0].mxu0 %v348
    %v421 = vpop.f32.mrb[0].mxu0
    %v422 = vadd.f32 %v292, %v421
    %v423 = vpop.f32.mrb[0].mxu0
    %424 = vdwg.mxu0
    %425 = vst [vmem:[#allocation7] sm:$0xff] %v417
    %426 = vst [vmem:[#allocation7 + $0x8] sm:$0xff] %v422
    // Predicated region
    $region22: #{tpu_custom_call.1} parent=1 // pred_check
      _
    $region23: #{tpu_custom_call.1} parent=1 // pred_check_branch
      %428 = sbr.rel (0) target = $region25
    $region24: #{tpu_custom_call.1} parent=1 // pred_region
      %s430 = ssub.s32 256, 256
      %431 = vsyncadd [#allocation4], %s430
      %s432 = sshll.u32 [#allocation7], 4
      %s433 = int_to_ptr.vmem [resolvable:$true] %s432
      %438 = dma.vmem_to_hbm [thread:$0]  %s433, 256, %s3, [#allocation4], 128, 128, 8
    $region25: #{tpu_custom_call.1} parent=1 // pred_fallthru
      _
    // Predicated region
    $region26: #{tpu_custom_call.1} parent=1 // pred_check
      _
    $region27: #{tpu_custom_call.1} parent=1 // pred_check_branch
      %440 = sbr.rel (0) target = $region29
    $region28: #{tpu_custom_call.1} parent=1 // pred_region
      %441 = dma.done [#allocation4], 256
    $region29: #{tpu_custom_call.1} parent=1 // pred_fallthru
      _
    %442 = vsyncpa [#allocation3], 1
    %443 = vsyncpa [#allocation6], 1
    %444 = vsyncpa [#allocation4], 1

</llo_original>
